<compile_context>
chip_gen: v6e
topology: v6e:2x2x1
jax: 0.10.0
libtpu: 0.0.40
codegen_flags: <defaults>
</compile_context>

<pallas_src>
import functools

import jax
import jax.numpy as jnp
from jax import lax
from jax.experimental import pallas as pl
from jax.experimental.pallas import tpu as pltpu

HIDDEN = 120        # logical hidden size of the PyTorch module
HPAD = 128          # lane-dense padded hidden size
DROP_P = 0.2

# Mixing constants (murmur3-style), written as int32 two's-complement Python ints.
_C1 = 0x9E3779B9 - (1 << 32)   # -1640531527
_C2 = 0x85EBCA6B - (1 << 32)   # -2048144789
_C3 = 0xC2B2AE35 - (1 << 32)   # -1028477387
_MASK31 = 0x7FFFFFFF


def _hash_bits(idx, seed):
    """Stateless per-element hash -> 31 nonnegative pseudo-random bits (int32).

    Only int32 add/mul/xor/and/shift ops (VPU-friendly, lowers on TPU and interpret).
    Values are masked nonnegative before each shift so `>>` behaves as a logical shift.
    """
    z = idx ^ (seed * _C1)
    z = (z * _C2) & _MASK31
    z = z ^ (z >> 15)
    z = (z * _C3) & _MASK31
    z = z ^ (z >> 13)
    z = (z * _C1) & _MASK31
    z = z ^ (z >> 16)
    return z


def residual_kernel(x_ref, w1_ref, b1_ref, w2_ref, b2_ref, seed_ref, o_ref, *,
                    keep_threshold: int, apply_dropout: bool):
    x = x_ref[...]

    # d1: x @ W1 + b1, then ReLU  (MXU, f32 accumulation)
    h = jnp.dot(x, w1_ref[...], preferred_element_type=jnp.float32) + b1_ref[...]
    h = jnp.maximum(h, 0.0)

    if apply_dropout:
        tb, hp = x_ref.shape
        row0 = pl.program_id(0) * tb                     # per-tile offset -> unique stream
        rows = lax.broadcasted_iota(jnp.int32, (tb, hp), 0) + row0
        cols = lax.broadcasted_iota(jnp.int32, (tb, hp), 1)
        bits = _hash_bits(rows * hp + cols, seed_ref[0])
        keep = bits >= keep_threshold                    # P(keep) = 1 - p
        # Survivors are NOT rescaled here: 1/(1-p) is folded into W2 by the wrapper.
        h = jnp.where(keep, h, 0.0)

    # d2: h @ W2 + b2
    y = jnp.dot(h, w2_ref[...], preferred_element_type=jnp.float32) + b2_ref[...]

    # residual add
    o_ref[...] = (x + y).astype(o_ref.dtype)


def _round_up(n, m):
    return ((n + m - 1) // m) * m


def residual_forward(x, w1, b1, w2, b2, seed, *, drop=True, p=DROP_P):
    """x: (B, 120) float32. w1, w2: PyTorch-style (H_out, H_in). b1, b2: (120,)."""
    B, H = x.shape
    assert H == HIDDEN

    # --- pad hidden 120 -> 128 (lane-dense) and pre-transpose to x @ W layout ---
    w1t = jnp.zeros((HPAD, HPAD), jnp.float32).at[:H, :H].set(
        jnp.asarray(w1, jnp.float32).T)
    w2_t = jnp.asarray(w2, jnp.float32).T
    if drop:
        w2_t = w2_t * (1.0 / (1.0 - p))   # fold dropout survivor scaling into W2
    w2t = jnp.zeros((HPAD, HPAD), jnp.float32).at[:H, :H].set(w2_t)
    b1r = jnp.zeros((1, HPAD), jnp.float32).at[0, :H].set(jnp.asarray(b1, jnp.float32))
    b2r = jnp.zeros((1, HPAD), jnp.float32).at[0, :H].set(jnp.asarray(b2, jnp.float32))
    seed_arr = jnp.asarray([seed], jnp.int32)

    # --- batch tiling: big tiles for DMA/compute pipelining, multiple of 8 sublanes ---
    TB = 512 if B >= 512 else _round_up(max(B, 1), 8)
    Bp = _round_up(B, TB)
    xp = jnp.zeros((Bp, HPAD), jnp.float32).at[:B, :H].set(x.astype(jnp.float32))

    keep_threshold = int(p * (1 << 31))
    kernel = functools.partial(residual_kernel,
                               keep_threshold=keep_threshold,
                               apply_dropout=drop)

    out = pl.pallas_call(
        kernel,
        out_shape=jax.ShapeDtypeStruct((Bp, HPAD), jnp.float32),
        grid=(Bp // TB,),
        in_specs=[
            pl.BlockSpec((TB, HPAD), lambda i: (i, 0)),          # x: tiled over batch
            pl.BlockSpec((HPAD, HPAD), lambda i: (0, 0)),        # W1: resident
            pl.BlockSpec((1, HPAD), lambda i: (0, 0)),           # b1: resident
            pl.BlockSpec((HPAD, HPAD), lambda i: (0, 0)),        # W2: resident
            pl.BlockSpec((1, HPAD), lambda i: (0, 0)),           # b2: resident
            pl.BlockSpec(memory_space=pltpu.MemorySpace.SMEM),   # seed scalar
        ],
        out_specs=pl.BlockSpec((TB, HPAD), lambda i: (i, 0)),
        compiler_params=pltpu.CompilerParams(
            dimension_semantics=("parallel",),   # batch axis -> both TCs on v7x
            vmem_limit_bytes=32 << 20,           # per-tile footprint is small; portable to v7x
        ),
    )(xp, w1t, b1r, w2t, b2r, seed_arr)

    return out[:B, :H].astype(x.dtype)


def _torch_linear_init(key, fan_in, fan_out):
    """Deterministic stand-in for torch.nn.Linear default init (uniform +/- 1/sqrt(fan_in))."""
    kw, kb = jax.random.split(key)
    bound = 1.0 / (fan_in ** 0.5)
    w = jax.random.uniform(kw, (fan_out, fan_in), jnp.float32, -bound, bound)
    b = jax.random.uniform(kb, (fan_out,), jnp.float32, -bound, bound)
    return w, b


if __name__ == "__main__":
    key = jax.random.PRNGKey(0)
    kx, k1, k2 = jax.random.split(key, 3)

    B = 8
    x = jax.random.normal(kx, (B, HIDDEN), jnp.float32)
    w1, b1 = _torch_linear_init(k1, HIDDEN, HIDDEN)
    w2, b2 = _torch_linear_init(k2, HIDDEN, HIDDEN)

    # Run with dropout active (module default: training mode, drop=True).
    out = jax.block_until_ready(
        residual_forward(x, w1, b1, w2, b2, seed=1234, drop=True))

    # Deterministic path (drop=False) checked against a pure-JAX reference.
    out_no_drop = jax.block_until_ready(
        residual_forward(x, w1, b1, w2, b2, seed=0, drop=False))
    ref_no_drop = x + (jnp.maximum(x @ w1.T + b1, 0.0) @ w2.T + b2)

    assert out.shape == (B, HIDDEN)
    assert bool(jnp.all(jnp.isfinite(out)))
    assert bool(jnp.allclose(out_no_drop, ref_no_drop, atol=1e-4, rtol=1e-4))

    # TODO(synk): dropout mask comes from an in-kernel stateless hash PRNG, deterministic
    # per seed but not bit-identical to torch.nn.Dropout's RNG stream.
    print("KERNEL_OK")
</pallas_src>

<mosaic_0001>
module attributes {stable_mosaic.version = 11 : i64} {
  func.func @residual_kernel(%arg0: i32, %arg1: memref<8x128xf32, #tpu.memory_space<vmem>>, %arg2: memref<128x128xf32, #tpu.memory_space<vmem>>, %arg3: memref<1x128xf32, #tpu.memory_space<vmem>>, %arg4: memref<128x128xf32, #tpu.memory_space<vmem>>, %arg5: memref<1x128xf32, #tpu.memory_space<vmem>>, %arg6: memref<1xi32, #tpu.memory_space<smem>>, %arg7: memref<8x128xf32, #tpu.memory_space<vmem>>) attributes {dimension_semantics = [#tpu.dimension_semantics<parallel>], iteration_bounds = array<i64: 1>, scalar_prefetch = 0 : i64, scratch_operands = 0 : i64, tpu.core_type = #tpu.core_type<tc>, window_params = [{transform_indices = @transform_0, window_bounds = array<i64: 8, 128>}, {pipeline_mode = #tpu.pipeline_mode<synchronous>, transform_indices = @transform_1, window_bounds = array<i64: 128, 128>}, {pipeline_mode = #tpu.pipeline_mode<synchronous>, transform_indices = @transform_2, window_bounds = array<i64: 1, 128>}, {pipeline_mode = #tpu.pipeline_mode<synchronous>, transform_indices = @transform_3, window_bounds = array<i64: 128, 128>}, {pipeline_mode = #tpu.pipeline_mode<synchronous>, transform_indices = @transform_4, window_bounds = array<i64: 1, 128>}, {transform_indices = @transform_5, window_bounds = array<i64: 1>}, {transform_indices = @transform_6, window_bounds = array<i64: 8, 128>}]} {
    %c0 = arith.constant 0 : index
    %c0_0 = arith.constant 0 : index
    %0 = vector.load %arg1[%c0, %c0_0] : memref<8x128xf32, #tpu.memory_space<vmem>>, vector<8x128xf32>
    %c0_1 = arith.constant 0 : index
    %c0_2 = arith.constant 0 : index
    %1 = vector.load %arg2[%c0_1, %c0_2] : memref<128x128xf32, #tpu.memory_space<vmem>>, vector<128x128xf32>
    %cst = arith.constant dense<0.000000e+00> : vector<8x128xf32>
    %2 = tpu.matmul %0, %1, %cst {dimension_numbers = #tpu.dot_dimension_numbers<[1], [0], [0], [1], [0, 0, 1, 1], [], []>} : vector<8x128xf32>, vector<128x128xf32>, vector<8x128xf32> -> vector<8x128xf32>
    %c0_3 = arith.constant 0 : index
    %c0_4 = arith.constant 0 : index
    %3 = vector.load %arg3[%c0_3, %c0_4] : memref<1x128xf32, #tpu.memory_space<vmem>>, vector<1x128xf32>
    %4 = vector.broadcast %3 : vector<1x128xf32> to vector<8x128xf32>
    %5 = arith.addf %2, %4 : vector<8x128xf32>
    %cst_5 = arith.constant 0.000000e+00 : f32
    %6 = vector.broadcast %cst_5 : f32 to vector<8x128xf32>
    %7 = arith.maximumf %5, %6 : vector<8x128xf32>
    %c8_i32 = arith.constant 8 : i32
    %8 = arith.muli %arg0, %c8_i32 : i32
    %9 = tpu.iota {dimensions = array<i32: 0>} : vector<8x128xi32>
    %10 = vector.broadcast %8 : i32 to vector<8x128xi32>
    %11 = arith.addi %9, %10 : vector<8x128xi32>
    %12 = tpu.iota {dimensions = array<i32: 1>} : vector<8x128xi32>
    %c128_i32 = arith.constant 128 : i32
    %13 = vector.broadcast %c128_i32 : i32 to vector<8x128xi32>
    %14 = arith.muli %11, %13 : vector<8x128xi32>
    %15 = arith.addi %14, %12 : vector<8x128xi32>
    %c0_6 = arith.constant 0 : index
    %16 = memref.load %arg6[%c0_6] : memref<1xi32, #tpu.memory_space<smem>>
    %c-1640531527_i32 = arith.constant -1640531527 : i32
    %17 = arith.muli %16, %c-1640531527_i32 : i32
    %18 = vector.broadcast %17 : i32 to vector<8x128xi32>
    %19 = arith.xori %15, %18 : vector<8x128xi32>
    %c-2048144789_i32 = arith.constant -2048144789 : i32
    %20 = vector.broadcast %c-2048144789_i32 : i32 to vector<8x128xi32>
    %21 = arith.muli %19, %20 : vector<8x128xi32>
    %c2147483647_i32 = arith.constant 2147483647 : i32
    %22 = vector.broadcast %c2147483647_i32 : i32 to vector<8x128xi32>
    %23 = arith.andi %21, %22 : vector<8x128xi32>
    %c15_i32 = arith.constant 15 : i32
    %24 = vector.broadcast %c15_i32 : i32 to vector<8x128xi32>
    %25 = arith.shrsi %23, %24 : vector<8x128xi32>
    %26 = arith.xori %23, %25 : vector<8x128xi32>
    %c-1028477387_i32 = arith.constant -1028477387 : i32
    %27 = vector.broadcast %c-1028477387_i32 : i32 to vector<8x128xi32>
    %28 = arith.muli %26, %27 : vector<8x128xi32>
    %c2147483647_i32_7 = arith.constant 2147483647 : i32
    %29 = vector.broadcast %c2147483647_i32_7 : i32 to vector<8x128xi32>
    %30 = arith.andi %28, %29 : vector<8x128xi32>
    %c13_i32 = arith.constant 13 : i32
    %31 = vector.broadcast %c13_i32 : i32 to vector<8x128xi32>
    %32 = arith.shrsi %30, %31 : vector<8x128xi32>
    %33 = arith.xori %30, %32 : vector<8x128xi32>
    %c-1640531527_i32_8 = arith.constant -1640531527 : i32
    %34 = vector.broadcast %c-1640531527_i32_8 : i32 to vector<8x128xi32>
    %35 = arith.muli %33, %34 : vector<8x128xi32>
    %c2147483647_i32_9 = arith.constant 2147483647 : i32
    %36 = vector.broadcast %c2147483647_i32_9 : i32 to vector<8x128xi32>
    %37 = arith.andi %35, %36 : vector<8x128xi32>
    %c16_i32 = arith.constant 16 : i32
    %38 = vector.broadcast %c16_i32 : i32 to vector<8x128xi32>
    %39 = arith.shrsi %37, %38 : vector<8x128xi32>
    %40 = arith.xori %37, %39 : vector<8x128xi32>
    %c429496729_i32 = arith.constant 429496729 : i32
    %41 = vector.broadcast %c429496729_i32 : i32 to vector<8x128xi32>
    %42 = arith.cmpi sge, %40, %41 : vector<8x128xi32>
    %cst_10 = arith.constant 0.000000e+00 : f32
    %43 = vector.broadcast %cst_10 : f32 to vector<8x128xf32>
    %44 = arith.select %42, %7, %43 : vector<8x128xi1>, vector<8x128xf32>
    %c0_11 = arith.constant 0 : index
    %c0_12 = arith.constant 0 : index
    %45 = vector.load %arg4[%c0_11, %c0_12] : memref<128x128xf32, #tpu.memory_space<vmem>>, vector<128x128xf32>
    %cst_13 = arith.constant dense<0.000000e+00> : vector<8x128xf32>
    %46 = tpu.matmul %44, %45, %cst_13 {dimension_numbers = #tpu.dot_dimension_numbers<[1], [0], [0], [1], [0, 0, 1, 1], [], []>} : vector<8x128xf32>, vector<128x128xf32>, vector<8x128xf32> -> vector<8x128xf32>
    %c0_14 = arith.constant 0 : index
    %c0_15 = arith.constant 0 : index
    %47 = vector.load %arg5[%c0_14, %c0_15] : memref<1x128xf32, #tpu.memory_space<vmem>>, vector<1x128xf32>
    %48 = vector.broadcast %47 : vector<1x128xf32> to vector<8x128xf32>
    %49 = arith.addf %46, %48 : vector<8x128xf32>
    %50 = arith.addf %0, %49 : vector<8x128xf32>
    %c0_16 = arith.constant 0 : index
    %c0_17 = arith.constant 0 : index
    %51 = vector.load %arg7[%c0_16, %c0_17] : memref<8x128xf32, #tpu.memory_space<vmem>>, vector<8x128xf32>
    tpu.vector_store %arg7[%c0_16, %c0_17], %50 {strides = array<i32>} : memref<8x128xf32, #tpu.memory_space<vmem>>, vector<8x128xf32>,
    return
  }
  func.func @transform_0(%arg0: i32) -> (i32, i32) {
    %c0_i32 = arith.constant 0 : i32
    %c0_i32_0 = arith.constant 0 : i32
    return %arg0, %c0_i32 : i32, i32
  }
  func.func @transform_1(%arg0: i32) -> (i32, i32) {
    %c0_i32 = arith.constant 0 : i32
    %c0_i32_0 = arith.constant 0 : i32
    %c0_i32_1 = arith.constant 0 : i32
    return %c0_i32, %c0_i32_0 : i32, i32
  }
  func.func @transform_2(%arg0: i32) -> (i32, i32) {
    %c0_i32 = arith.constant 0 : i32
    %c0_i32_0 = arith.constant 0 : i32
    %c0_i32_1 = arith.constant 0 : i32
    return %c0_i32, %c0_i32_0 : i32, i32
  }
  func.func @transform_3(%arg0: i32) -> (i32, i32) {
    %c0_i32 = arith.constant 0 : i32
    %c0_i32_0 = arith.constant 0 : i32
    %c0_i32_1 = arith.constant 0 : i32
    return %c0_i32, %c0_i32_0 : i32, i32
  }
  func.func @transform_4(%arg0: i32) -> (i32, i32) {
    %c0_i32 = arith.constant 0 : i32
    %c0_i32_0 = arith.constant 0 : i32
    %c0_i32_1 = arith.constant 0 : i32
    return %c0_i32, %c0_i32_0 : i32, i32
  }
  func.func @transform_5(%arg0: i32) -> i32 {
    %c0_i32 = arith.constant 0 : i32
    %c0_i32_0 = arith.constant 0 : i32
    return %c0_i32 : i32
  }
  func.func @transform_6(%arg0: i32) -> (i32, i32) {
    %c0_i32 = arith.constant 0 : i32
    %c0_i32_0 = arith.constant 0 : i32
    return %arg0, %c0_i32 : i32, i32
  }
}

</mosaic_0001>

<llo_original>
// kernel: tpu_custom_call.1
$region0: #{tpu_custom_call.1}
  #allocation0 [shape = 'u32[]', space=smem, size = 0x4, offset = 0x4, fixed_abs, tag = 'smem constant byte address 0x4 - core index']
  #allocation1 [shape = 'u32[144,128]{1,0:T(1,128)}', space=vmem, size = 0x12000, scoped, tag = 'internal scratch']
  #allocation2 [shape = 's32[1]{0:T(128)S(6)}', space=smem, size = 0x200, scoped, tag = 'scoped memory for tpu_custom_call.1']
  %s0 = inlined_call_operand.hbm [shape: f32[8,128], index: 0, kind: input, shape index: {}]
  %s1 = inlined_call_operand.hbm [shape: f32[128,128], index: 1, kind: input, shape index: {}]
  %s2 = inlined_call_operand.vmem [shape: f32[1,128], index: 2, kind: input, shape index: {}]
  %s3 = inlined_call_operand.hbm [shape: f32[128,128], index: 3, kind: input, shape index: {}]
  %s4 = inlined_call_operand.vmem [shape: f32[1,128], index: 4, kind: input, shape index: {}]
  %s5 = inlined_call_operand.<no memory space> [shape: s32[1], index: 5, kind: input, shape index: {}]
  %s6 = inlined_call_operand.hbm [shape: f32[8,128], index: 6, kind: output, shape index: {}]
  %s7 = sld [smem:[#allocation0]]
  $region46: #{tpu_custom_call.1} parent=0
    _
  %s9 = ssub.s32 1, %s7
  %s10 = scalar_select 0, %s9, %s7
  %11 = sst [smem:[#allocation2]] %s5
  $region1: #{tpu_custom_call.1} parent=0
    #allocation3 [shape = 'u8[4096]{0}', space=vmem, size = 0x1000, scoped, tag = 'input window, operand 0, single buffered']
    #allocation4 [shape = 's32[1]{0}', space=sflag, size = 0x4, scoped, tag = 'scoped memory for tpu_custom_call.1']
    #allocation5 [shape = 's32[1]{0}', space=sflag, size = 0x4, scoped, tag = 'scoped memory for tpu_custom_call.1']
    #allocation6 [shape = 'u8[65536]{0}', space=vmem, size = 0x10000, scoped, tag = 'input window, operand 1, single buffered']
    #allocation7 [shape = 's32[1]{0}', space=sflag, size = 0x4, scoped, tag = 'scoped memory for tpu_custom_call.1']
    #allocation8 [shape = 'u8[65536]{0}', space=vmem, size = 0x10000, scoped, tag = 'input window, operand 3, single buffered']
    #allocation9 [shape = 'u8[4096]{0}', space=vmem, size = 0x1000, scoped, tag = 'output window, operand 0, single buffered']
    %12 = vsyncpa [#allocation4], 0
    %13 = vsyncpa [#allocation7], 0
    %14 = vsyncpa [#allocation5], 0
    // Predicated region
    $region2: #{tpu_custom_call.1} parent=1 // pred_check
      _
    $region3: #{tpu_custom_call.1} parent=1 // pred_check_branch
      %16 = sbr.rel (0) target = $region5
    $region4: #{tpu_custom_call.1} parent=1 // pred_region
      %s18 = ssub.s32 128, 128
      %19 = vsyncadd [#allocation4], %s18
      %s21 = sshll.u32 [#allocation3], 4
      %s22 = int_to_ptr.vmem [resolvable:$true] %s21
      %24 = dma.hbm_to_vmem [thread:$0]  %s0, 128, %s22, [#allocation4]
    $region5: #{tpu_custom_call.1} parent=1 // pred_fallthru
      _
    // Predicated region
    $region6: #{tpu_custom_call.1} parent=1 // pred_check
      _
    $region7: #{tpu_custom_call.1} parent=1 // pred_check_branch
      %26 = sbr.rel (0) target = $region9
    $region8: #{tpu_custom_call.1} parent=1 // pred_region
      %s28 = ssub.s32 2048, 2048
      %29 = vsyncadd [#allocation7], %s28
      %s30 = sshll.u32 [#allocation6], 4
      %s31 = int_to_ptr.vmem [resolvable:$true] %s30
      %36 = dma.hbm_to_vmem [thread:$0]  %s1, 2048, %s31, [#allocation7], 128, 128, 8
    $region9: #{tpu_custom_call.1} parent=1 // pred_fallthru
      _
    // Predicated region
    $region10: #{tpu_custom_call.1} parent=1 // pred_check
      _
    $region11: #{tpu_custom_call.1} parent=1 // pred_check_branch
      %38 = sbr.rel (0) target = $region13
    $region12: #{tpu_custom_call.1} parent=1 // pred_region
      _
    $region13: #{tpu_custom_call.1} parent=1 // pred_fallthru
      _
    // Predicated region
    $region14: #{tpu_custom_call.1} parent=1 // pred_check
      _
    $region15: #{tpu_custom_call.1} parent=1 // pred_check_branch
      %40 = sbr.rel (0) target = $region17
    $region16: #{tpu_custom_call.1} parent=1 // pred_region
      %s42 = ssub.s32 2048, 2048
      %43 = vsyncadd [#allocation7], %s42
      %s44 = sshll.u32 [#allocation8], 4
      %s45 = int_to_ptr.vmem [resolvable:$true] %s44
      %50 = dma.hbm_to_vmem [thread:$0]  %s3, 2048, %s45, [#allocation7], 128, 128, 8
    $region17: #{tpu_custom_call.1} parent=1 // pred_fallthru
      _
    // Predicated region
    $region18: #{tpu_custom_call.1} parent=1 // pred_check
      _
    $region19: #{tpu_custom_call.1} parent=1 // pred_check_branch
      %52 = sbr.rel (0) target = $region21
    $region20: #{tpu_custom_call.1} parent=1 // pred_region
      _
    $region21: #{tpu_custom_call.1} parent=1 // pred_fallthru
      _
    // Predicated region
    $region22: #{tpu_custom_call.1} parent=1 // pred_check
      _
    $region23: #{tpu_custom_call.1} parent=1 // pred_check_branch
      %54 = sbr.rel (0) target = $region25
    $region24: #{tpu_custom_call.1} parent=1 // pred_region
      _
    $region25: #{tpu_custom_call.1} parent=1 // pred_fallthru
      _
    // Predicated region
    $region26: #{tpu_custom_call.1} parent=1 // pred_check
      _
    $region27: #{tpu_custom_call.1} parent=1 // pred_check_branch
      %56 = sbr.rel (0) target = $region29
    $region28: #{tpu_custom_call.1} parent=1 // pred_region
      %57 = dma.done [#allocation4], 128
    $region29: #{tpu_custom_call.1} parent=1 // pred_fallthru
      _
    // Predicated region
    $region30: #{tpu_custom_call.1} parent=1 // pred_check
      _
    $region31: #{tpu_custom_call.1} parent=1 // pred_check_branch
      %59 = sbr.rel (0) target = $region33
    $region32: #{tpu_custom_call.1} parent=1 // pred_region
      %60 = dma.done [#allocation7], 2048
    $region33: #{tpu_custom_call.1} parent=1 // pred_fallthru
      _
    // Predicated region
    $region34: #{tpu_custom_call.1} parent=1 // pred_check
      _
    $region35: #{tpu_custom_call.1} parent=1 // pred_check_branch
      %62 = sbr.rel (0) target = $region37
    $region36: #{tpu_custom_call.1} parent=1 // pred_region
      %63 = dma.done [#allocation7], 2048
    $region37: #{tpu_custom_call.1} parent=1 // pred_fallthru
      _
    %v64 = vld [vmem:[#allocation3] sm:$0xff]
    %v65 = vld [vmem:[#allocation6] sm:$0xff]
    %v66 = vld [vmem:[#allocation6 + $0x8] sm:$0xff]
    %v67 = vld [vmem:[#allocation6 + $0x10] sm:$0xff]
    %v68 = vld [vmem:[#allocation6 + $0x18] sm:$0xff]
    %v69 = vld [vmem:[#allocation6 + $0x20] sm:$0xff]
    %v70 = vld [vmem:[#allocation6 + $0x28] sm:$0xff]
    %v71 = vld [vmem:[#allocation6 + $0x30] sm:$0xff]
    %v72 = vld [vmem:[#allocation6 + $0x38] sm:$0xff]
    %v73 = vld [vmem:[#allocation6 + $0x40] sm:$0xff]
    %v74 = vld [vmem:[#allocation6 + $0x48] sm:$0xff]
    %v75 = vld [vmem:[#allocation6 + $0x50] sm:$0xff]
    %v76 = vld [vmem:[#allocation6 + $0x58] sm:$0xff]
    %v77 = vld [vmem:[#allocation6 + $0x60] sm:$0xff]
    %v78 = vld [vmem:[#allocation6 + $0x68] sm:$0xff]
    %v79 = vld [vmem:[#allocation6 + $0x70] sm:$0xff]
    %v80 = vld [vmem:[#allocation6 + $0x78] sm:$0xff]
    %v81 = vld [vmem:[%s2] sm:$0x1]
    %v83 = vlaneseq
    %v84 = vshrl.u32 %v83, 7
    %v85 = vsub.s32 0, %v84
    %v86 = vrot.slane %v81, %v85
    %88 = vmatprep.subr.mxu0 0.0
    %89 = vmatpush1.msra.mxu0 %v80
    %90 = vmatprep.subr.mxu0 0.0
    %91 = vmatpush1.msra.mxu0 %v79
    %92 = vmatprep.subr.mxu0 0.0
    %93 = vmatpush1.msra.mxu0 %v78
    %94 = vmatprep.subr.mxu0 0.0
    %95 = vmatpush1.msra.mxu0 %v77
    %96 = vmatprep.subr.mxu0 0.0
    %97 = vmatpush1.msra.mxu0 %v76
    %98 = vmatprep.subr.mxu0 0.0
    %99 = vmatpush1.msra.mxu0 %v75
    %100 = vmatprep.subr.mxu0 0.0
    %101 = vmatpush1.msra.mxu0 %v74
    %102 = vmatprep.subr.mxu0 0.0
    %103 = vmatpush1.msra.mxu0 %v73
    %104 = vmatprep.subr.mxu0 0.0
    %105 = vmatpush1.msra.mxu0 %v72
    %106 = vmatprep.subr.mxu0 0.0
    %107 = vmatpush1.msra.mxu0 %v71
    %108 = vmatprep.subr.mxu0 0.0
    %109 = vmatpush1.msra.mxu0 %v70
    %110 = vmatprep.subr.mxu0 0.0
    %111 = vmatpush1.msra.mxu0 %v69
    %112 = vmatprep.subr.mxu0 0.0
    %113 = vmatpush1.msra.mxu0 %v68
    %114 = vmatprep.subr.mxu0 0.0
    %115 = vmatpush1.msra.mxu0 %v67
    %116 = vmatprep.subr.mxu0 0.0
    %117 = vmatpush1.msra.mxu0 %v66
    %118 = vmatprep.subr.mxu0 0.0
    %119 = vmatpush1.msra.mxu0 %v65
    %120 = vmatprep.subr.mxu0 0.0
    %121 = vmatpush2.msra.mxu0 0.0
    %122 = vmatprep.subr.mxu0 0.0
    %123 = vmatpush2.msra.mxu0 0.0
    %124 = vmatprep.subr.mxu0 0.0
    %125 = vmatpush2.msra.mxu0 0.0
    %126 = vmatprep.subr.mxu0 0.0
    %127 = vmatpush2.msra.mxu0 0.0
    %128 = vmatprep.subr.mxu0 0.0
    %129 = vmatpush2.msra.mxu0 0.0
    %130 = vmatprep.subr.mxu0 0.0
    %131 = vmatpush2.msra.mxu0 0.0
    %132 = vmatprep.subr.mxu0 0.0
    %133 = vmatpush2.msra.mxu0 0.0
    %134 = vmatprep.subr.mxu0 0.0
    %135 = vmatpush2.msra.mxu0 0.0
    %136 = vmatprep.subr.mxu0 0.0
    %137 = vmatpush2.msra.mxu0 0.0
    %138 = vmatprep.subr.mxu0 0.0
    %139 = vmatpush2.msra.mxu0 0.0
    %140 = vmatprep.subr.mxu0 0.0
    %141 = vmatpush2.msra.mxu0 0.0
    %142 = vmatprep.subr.mxu0 0.0
    %143 = vmatpush2.msra.mxu0 0.0
    %144 = vmatprep.subr.mxu0 0.0
    %145 = vmatpush2.msra.mxu0 0.0
    %146 = vmatprep.subr.mxu0 0.0
    %147 = vmatpush2.msra.mxu0 0.0
    %148 = vmatprep.subr.mxu0 0.0
    %149 = vmatpush2.msra.mxu0 0.0
    %150 = vmatprep.subr.mxu0 0.0
    %151 = vmatpush2.msra.mxu0 0.0
    %152 = vmatprep.mubr.f32.mxu0 0.0
    %153 = vmatmul.mubr.f32.gmra.mxu0 %v64
    %v154 = vpop.f32.mrf.mxu0
    %v155 = vadd.f32 %v86, %v154
    %v156 = vpop.f32.mrf.mxu0
    %157 = vdwg.mxu0
    %v158 = vmax.f32 %v155, 0.0
    %s159 = smul.u32 0, 8
    %v160 = vlaneseq
    %v161 = vshrl.u32 %v160, 7
    %v162 = vstv %s159
    %v163 = vadd.s32 %v161, %v162
    %v164 = vlaneseq
    %v165 = vand.u32 %v164, 127
    %v166 = vmul.u32 %v163, 128
    %v167 = vadd.s32 %v166, %v165
    %s168 = sld [smem:[#allocation2]]
    %s169 = smul.u32 %s168, 2654435769
    %v170 = vstv %s169
    %v171 = vxor.u32 %v167, %v170
    %v172 = vmul.u32 %v171, 2246822507
    %v173 = vand.u32 %v172, 2147483647
    %v174 = vshra.s32 %v173, 15
    %v175 = vxor.u32 %v173, %v174
    %v176 = vmul.u32 %v175, 3266489909
    %v177 = vand.u32 %v176, 2147483647
    %v178 = vshra.s32 %v177, 13
    %v179 = vxor.u32 %v177, %v178
    %v180 = vmul.u32 %v179, 2654435769
    %v181 = vand.u32 %v180, 2147483647
    %v182 = vshra.s32 %v181, 16
    %v183 = vxor.u32 %v181, %v182
    %vm184 = vcmp.ge.s32.totalorder %v183, 429496729
    %v185 = vsel %vm184, %v158, 0.0
    %v186 = vld [vmem:[#allocation8] sm:$0xff]
    %v187 = vld [vmem:[#allocation8 + $0x8] sm:$0xff]
    %v188 = vld [vmem:[#allocation8 + $0x10] sm:$0xff]
    %v189 = vld [vmem:[#allocation8 + $0x18] sm:$0xff]
    %v190 = vld [vmem:[#allocation8 + $0x20] sm:$0xff]
    %v191 = vld [vmem:[#allocation8 + $0x28] sm:$0xff]
    %v192 = vld [vmem:[#allocation8 + $0x30] sm:$0xff]
    %v193 = vld [vmem:[#allocation8 + $0x38] sm:$0xff]
    %v194 = vld [vmem:[#allocation8 + $0x40] sm:$0xff]
    %v195 = vld [vmem:[#allocation8 + $0x48] sm:$0xff]
    %v196 = vld [vmem:[#allocation8 + $0x50] sm:$0xff]
    %v197 = vld [vmem:[#allocation8 + $0x58] sm:$0xff]
    %v198 = vld [vmem:[#allocation8 + $0x60] sm:$0xff]
    %v199 = vld [vmem:[#allocation8 + $0x68] sm:$0xff]
    %v200 = vld [vmem:[#allocation8 + $0x70] sm:$0xff]
    %v201 = vld [vmem:[#allocation8 + $0x78] sm:$0xff]
    %v202 = vld [vmem:[%s4] sm:$0x1]
    %v204 = vlaneseq
    %v205 = vshrl.u32 %v204, 7
    %v206 = vsub.s32 0, %v205
    %v207 = vrot.slane %v202, %v206
    %209 = vmatprep.subr.mxu0 0.0
    %210 = vmatpush1.msra.mxu0 %v201
    %211 = vmatprep.subr.mxu0 0.0
    %212 = vmatpush1.msra.mxu0 %v200
    %213 = vmatprep.subr.mxu0 0.0
    %214 = vmatpush1.msra.mxu0 %v199
    %215 = vmatprep.subr.mxu0 0.0
    %216 = vmatpush1.msra.mxu0 %v198
    %217 = vmatprep.subr.mxu0 0.0
    %218 = vmatpush1.msra.mxu0 %v197
    %219 = vmatprep.subr.mxu0 0.0
    %220 = vmatpush1.msra.mxu0 %v196
    %221 = vmatprep.subr.mxu0 0.0
    %222 = vmatpush1.msra.mxu0 %v195
    %223 = vmatprep.subr.mxu0 0.0
    %224 = vmatpush1.msra.mxu0 %v194
    %225 = vmatprep.subr.mxu0 0.0
    %226 = vmatpush1.msra.mxu0 %v193
    %227 = vmatprep.subr.mxu0 0.0
    %228 = vmatpush1.msra.mxu0 %v192
    %229 = vmatprep.subr.mxu0 0.0
    %230 = vmatpush1.msra.mxu0 %v191
    %231 = vmatprep.subr.mxu0 0.0
    %232 = vmatpush1.msra.mxu0 %v190
    %233 = vmatprep.subr.mxu0 0.0
    %234 = vmatpush1.msra.mxu0 %v189
    %235 = vmatprep.subr.mxu0 0.0
    %236 = vmatpush1.msra.mxu0 %v188
    %237 = vmatprep.subr.mxu0 0.0
    %238 = vmatpush1.msra.mxu0 %v187
    %239 = vmatprep.subr.mxu0 0.0
    %240 = vmatpush1.msra.mxu0 %v186
    %241 = vmatprep.subr.mxu0 0.0
    %242 = vmatpush2.msra.mxu0 0.0
    %243 = vmatprep.subr.mxu0 0.0
    %244 = vmatpush2.msra.mxu0 0.0
    %245 = vmatprep.subr.mxu0 0.0
    %246 = vmatpush2.msra.mxu0 0.0
    %247 = vmatprep.subr.mxu0 0.0
    %248 = vmatpush2.msra.mxu0 0.0
    %249 = vmatprep.subr.mxu0 0.0
    %250 = vmatpush2.msra.mxu0 0.0
    %251 = vmatprep.subr.mxu0 0.0
    %252 = vmatpush2.msra.mxu0 0.0
    %253 = vmatprep.subr.mxu0 0.0
    %254 = vmatpush2.msra.mxu0 0.0
    %255 = vmatprep.subr.mxu0 0.0
    %256 = vmatpush2.msra.mxu0 0.0
    %257 = vmatprep.subr.mxu0 0.0
    %258 = vmatpush2.msra.mxu0 0.0
    %259 = vmatprep.subr.mxu0 0.0
    %260 = vmatpush2.msra.mxu0 0.0
    %261 = vmatprep.subr.mxu0 0.0
    %262 = vmatpush2.msra.mxu0 0.0
    %263 = vmatprep.subr.mxu0 0.0
    %264 = vmatpush2.msra.mxu0 0.0
    %265 = vmatprep.subr.mxu0 0.0
    %266 = vmatpush2.msra.mxu0 0.0
    %267 = vmatprep.subr.mxu0 0.0
    %268 = vmatpush2.msra.mxu0 0.0
    %269 = vmatprep.subr.mxu0 0.0
    %270 = vmatpush2.msra.mxu0 0.0
    %271 = vmatprep.subr.mxu0 0.0
    %272 = vmatpush2.msra.mxu0 0.0
    %273 = vmatprep.mubr.f32.mxu0 0.0
    %274 = vmatmul.mubr.f32.gmra.mxu0 %v185
    %v275 = vpop.f32.mrf.mxu0
    %v276 = vadd.f32 %v207, %v275
    %v277 = vpop.f32.mrf.mxu0
    %278 = vdwg.mxu0
    %v279 = vadd.f32 %v64, %v276
    %280 = vst [vmem:[#allocation9] sm:$0xff] %v279
    // Predicated region
    $region38: #{tpu_custom_call.1} parent=1 // pred_check
      _
    $region39: #{tpu_custom_call.1} parent=1 // pred_check_branch
      %282 = sbr.rel (0) target = $region41
    $region40: #{tpu_custom_call.1} parent=1 // pred_region
      %s284 = ssub.s32 128, 128
      %285 = vsyncadd [#allocation5], %s284
      %s287 = sshll.u32 [#allocation9], 4
      %s288 = int_to_ptr.vmem [resolvable:$true] %s287
      %290 = dma.vmem_to_hbm [thread:$0]  %s288, 128, %s6, [#allocation5]
    $region41: #{tpu_custom_call.1} parent=1 // pred_fallthru
      _
    // Predicated region
    $region42: #{tpu_custom_call.1} parent=1 // pred_check
      _
    $region43: #{tpu_custom_call.1} parent=1 // pred_check_branch
      %292 = sbr.rel (0) target = $region45
    $region44: #{tpu_custom_call.1} parent=1 // pred_region
      %293 = dma.done [#allocation5], 128
    $region45: #{tpu_custom_call.1} parent=1 // pred_fallthru
      _
    %294 = vsyncpa [#allocation4], 1
    %295 = vsyncpa [#allocation7], 1
    %296 = vsyncpa [#allocation5], 1

</llo_original>
